<compile_context>
chip_gen: v6e
topology: v6e:2x2x1
jax: 0.10.0
libtpu: 0.0.40
codegen_flags: <defaults>
</compile_context>

<pallas_src>
import functools

import jax
import jax.numpy as jnp
from jax.experimental import pallas as pl
from jax.experimental.pallas import tpu as pltpu


def _mape_kernel(pred_ref, true_ref, out_ref, acc_ref, *,
                 alpha, beta, block_rows, lane_width, n_blocks,
                 tail_valid_rows):
    i = pl.program_id(0)

    @pl.when(i == 0)
    def _():
        acc_ref[...] = jnp.zeros_like(acc_ref)

    y_pred = pred_ref[...].astype(jnp.float32)
    y_true = true_ref[...].astype(jnp.float32)

    eps = jnp.float32(1e-8)
    denom = jnp.abs(y_true) + eps
    # EUP vrcp + one Newton-Raphson step (~2^-24 rel. error): no VALU divide sequence.
    inv = pl.reciprocal(denom, approx=True)
    inv = inv * (jnp.float32(2.0) - denom * inv)

    pct = (y_true - y_pred) * inv
    pen = jnp.where(pct > 0, pct, jnp.float32(alpha) * pct)
    z = jnp.float32(beta) * jnp.abs(pen)
    # sigmoid(z) - 0.5 == 0.5 * tanh(0.5 * z)  (single EUP op, no trailing -0.5)
    bounded = jnp.float32(0.5) * jnp.tanh(jnp.float32(0.5) * z)

    def partial_sum(x):
        # Reduce (block_rows, lane_width) -> accumulator shape using only VALU adds:
        # split-major reshape keeps the minor (lane) dim intact, so no relayout and
        # no cross-lane/XLU work on the hot path.
        if block_rows % 8 == 0 and block_rows > 8:
            return x.reshape(block_rows // 8, 8, lane_width).sum(axis=0)
        return x

    if tail_valid_rows is None:
        # No ragged tail: every block accumulates unmasked.
        acc_ref[...] += partial_sum(bounded)
    else:
        # Only the tail block pays the mask (one iota + cmp + select).
        @pl.when(i < n_blocks - 1)
        def _():
            acc_ref[...] += partial_sum(bounded)

        @pl.when(i == n_blocks - 1)
        def _():
            rows = jax.lax.broadcasted_iota(jnp.int32, bounded.shape, 0)
            masked = jnp.where(rows < tail_valid_rows, bounded, jnp.float32(0.0))
            acc_ref[...] += partial_sum(masked)

    # Single cross-lane/cross-sublane reduction, epilogue only.
    @pl.when(i == n_blocks - 1)
    def _():
        total = jnp.sum(acc_ref[...])
        out_ref[...] = jnp.full((1, 128), total, dtype=jnp.float32)


def _vmem_capacity_bytes():
    try:
        cap = getattr(pltpu.get_tpu_info(), "vmem_capacity_bytes", None)
        if cap:
            return int(cap)
    except Exception:
        pass
    return 64 << 20  # conservative (v7x-sized) fallback


def modified_mape(y_pred, y_true, alpha=0.5, beta=1.0, *, target_tile_bytes=None):
    assert y_pred.shape == y_true.shape
    total_n = int(y_pred.size)
    assert total_n > 0
    itemsize = jnp.dtype(y_pred.dtype).itemsize

    # ---- Lane-dense flat view (metadata-only reshape for contiguous arrays) ----
    pred = y_pred.reshape(-1)
    true = y_true.reshape(-1)
    padded_n = ((total_n + 127) // 128) * 128
    if padded_n != total_n:
        # Neutral pad: pred == true == 1 -> pct == 0 -> bounded == 0 (exactly).
        pad = padded_n - total_n
        pred = jnp.concatenate([pred, jnp.ones((pad,), dtype=pred.dtype)])
        true = jnp.concatenate([true, jnp.ones((pad,), dtype=true.dtype)])
    lane_width = 128
    for w in (1024, 512, 256):
        if padded_n % w == 0:
            lane_width = w
            break
    rows = padded_n // lane_width
    pred2d = pred.reshape(rows, lane_width)
    true2d = true.reshape(rows, lane_width)

    # ---- Per-generation tile / VMEM sizing -------------------------------------
    vmem_cap = _vmem_capacity_bytes()
    if target_tile_bytes is None:
        # ~vmem_cap/10 of f32 compute terms per input tile: 2 inputs x 2 pipeline
        # buffers + f32 temporaries + headroom stays under ~3/4 of capacity.
        target_tile_bytes = max(1 << 20, vmem_cap // 10)
    elems_target = max(int(target_tile_bytes) // 4, lane_width)
    block_rows = max(16, ((elems_target // lane_width) // 16) * 16)
    if block_rows >= rows:
        block_rows = rows                          # single full-array block
    n_blocks = (rows + block_rows - 1) // block_rows
    tail_rows = rows - (n_blocks - 1) * block_rows
    tail_valid_rows = None if tail_rows == block_rows else tail_rows
    acc_rows = 8 if (block_rows % 8 == 0 and block_rows > 8) else block_rows

    in_tile_bytes = block_rows * lane_width * itemsize
    f32_tile_bytes = block_rows * lane_width * 4
    vmem_limit = (4 * in_tile_bytes + 2 * f32_tile_bytes
                  + acc_rows * lane_width * 4 + (4 << 20))
    vmem_limit = max(16 << 20, min(vmem_limit, (vmem_cap * 3) // 4))

    kernel = functools.partial(
        _mape_kernel, alpha=float(alpha), beta=float(beta),
        block_rows=block_rows, lane_width=lane_width, n_blocks=n_blocks,
        tail_valid_rows=tail_valid_rows)

    cost = pl.CostEstimate(flops=16 * padded_n, transcendentals=2 * padded_n,
                           bytes_accessed=2 * padded_n * itemsize + 512)

    partials = pl.pallas_call(
        kernel,
        out_shape=jax.ShapeDtypeStruct((1, 128), jnp.float32),
        grid_spec=pltpu.PrefetchScalarGridSpec(
            num_scalar_prefetch=0,
            grid=(n_blocks,),
            in_specs=[
                pl.BlockSpec((block_rows, lane_width), lambda i: (i, 0)),
                pl.BlockSpec((block_rows, lane_width), lambda i: (i, 0)),
            ],
            out_specs=pl.BlockSpec((1, 128), lambda i: (0, 0)),
            scratch_shapes=[pltpu.VMEM((acc_rows, lane_width), jnp.float32)],
        ),
        compiler_params=pltpu.CompilerParams(
            dimension_semantics=("arbitrary",),
            vmem_limit_bytes=int(vmem_limit),
        ),
        cost_estimate=cost,
    )(pred2d, true2d)

    # Mean uses the TRUE element count (padding contributes exactly zero).
    return partials[0, 0] * jnp.float32(100.0 / total_n)


def modified_mape_ref(y_pred, y_true, alpha=0.5, beta=1.0):
    eps = 1e-8
    pe = (y_true - y_pred) / (jnp.abs(y_true) + eps)
    pen = jnp.where(pe > 0, pe, alpha * pe)
    bounded = jax.nn.sigmoid(beta * jnp.abs(pen)) - 0.5
    return jnp.mean(bounded) * 100.0


if __name__ == "__main__":
    key = jax.random.PRNGKey(0)
    k1, k2, k3, k4, k5, k6 = jax.random.split(key, 6)

    # Case 1: small loss-module-sized tensors; single full-array block.
    y_pred = jax.random.normal(k1, (16, 256), dtype=jnp.float32)
    y_true = jax.random.normal(k2, (16, 256), dtype=jnp.float32) + 1.0
    loss = jax.block_until_ready(modified_mape(y_pred, y_true, alpha=0.5, beta=1.0))
    ref = modified_mape_ref(y_pred, y_true, alpha=0.5, beta=1.0)
    assert jnp.allclose(loss, ref, rtol=1e-5, atol=3e-5), (loss, ref)

    # Case 2: forced small tiles -> multi-block grid with a masked tail block
    # (50*256 elems -> lane_width 512, 25 rows, block_rows 16 -> 2 blocks, tail=9).
    y_pred2 = jax.random.normal(k3, (50, 256), dtype=jnp.float32)
    y_true2 = jax.random.normal(k4, (50, 256), dtype=jnp.float32) + 1.0
    loss2 = jax.block_until_ready(
        modified_mape(y_pred2, y_true2, alpha=0.5, beta=1.0,
                      target_tile_bytes=16 * 512 * 4))
    ref2 = modified_mape_ref(y_pred2, y_true2, alpha=0.5, beta=1.0)
    assert jnp.allclose(loss2, ref2, rtol=1e-5, atol=3e-5), (loss2, ref2)

    # Case 3: element count not a multiple of 128 -> exercises the neutral-pad path.
    y_pred3 = jax.random.normal(k5, (7, 37), dtype=jnp.float32)
    y_true3 = jax.random.normal(k6, (7, 37), dtype=jnp.float32) + 1.0
    loss3 = jax.block_until_ready(modified_mape(y_pred3, y_true3, alpha=0.5, beta=1.0))
    ref3 = modified_mape_ref(y_pred3, y_true3, alpha=0.5, beta=1.0)
    assert jnp.allclose(loss3, ref3, rtol=1e-5, atol=3e-5), (loss3, ref3)

    print("KERNEL_OK")
</pallas_src>

<mosaic_0001>
module attributes {stable_mosaic.version = 11 : i64} {
  func.func @_mape_kernel(%arg0: i32, %arg1: memref<4x1024xf32, #tpu.memory_space<vmem>>, %arg2: memref<4x1024xf32, #tpu.memory_space<vmem>>, %arg3: memref<1x128xf32, #tpu.memory_space<vmem>>, %arg4: memref<4x1024xf32, #tpu.memory_space<vmem>>) attributes {dimension_semantics = [#tpu.dimension_semantics<arbitrary>], iteration_bounds = array<i64: 1>, scalar_prefetch = 0 : i64, scratch_operands = 1 : i64, tpu.core_type = #tpu.core_type<tc>, window_params = [{transform_indices = @transform_0, window_bounds = array<i64: 4, 1024>}, {transform_indices = @transform_1, window_bounds = array<i64: 4, 1024>}, {pipeline_mode = #tpu.pipeline_mode<synchronous>, transform_indices = @transform_2, window_bounds = array<i64: 1, 128>}]} {
    %c0_i32 = arith.constant 0 : i32
    %0 = arith.cmpi eq, %arg0, %c0_i32 : i32
    %1 = arith.extui %0 : i1 to i32
    %c0_i32_0 = arith.constant 0 : i32
    %2 = arith.cmpi ne, %1, %c0_i32_0 : i32
    scf.if %2 {
      %cst_16 = arith.constant 0.000000e+00 : f32
      %34 = vector.broadcast %cst_16 : f32 to vector<4x1024xf32>
      %c0_17 = arith.constant 0 : index
      %c0_18 = arith.constant 0 : index
      %35 = vector.load %arg4[%c0_17, %c0_18] : memref<4x1024xf32, #tpu.memory_space<vmem>>, vector<4x1024xf32>
      tpu.vector_store %arg4[%c0_17, %c0_18], %34 {strides = array<i32>} : memref<4x1024xf32, #tpu.memory_space<vmem>>, vector<4x1024xf32>,
    } else {
    }
    %c0 = arith.constant 0 : index
    %c0_1 = arith.constant 0 : index
    %3 = vector.load %arg1[%c0, %c0_1] : memref<4x1024xf32, #tpu.memory_space<vmem>>, vector<4x1024xf32>
    %c0_2 = arith.constant 0 : index
    %c0_3 = arith.constant 0 : index
    %4 = vector.load %arg2[%c0_2, %c0_3] : memref<4x1024xf32, #tpu.memory_space<vmem>>, vector<4x1024xf32>
    %5 = math.absf %4 : vector<4x1024xf32>
    %cst = arith.constant 9.99999993E-9 : f32
    %6 = vector.broadcast %cst : f32 to vector<4x1024xf32>
    %7 = arith.addf %5, %6 : vector<4x1024xf32>
    %8 = tpu.reciprocal %7 {approx = true} : vector<4x1024xf32> -> vector<4x1024xf32>
    %9 = arith.mulf %7, %8 : vector<4x1024xf32>
    %cst_4 = arith.constant 2.000000e+00 : f32
    %10 = vector.broadcast %cst_4 : f32 to vector<4x1024xf32>
    %11 = arith.subf %10, %9 : vector<4x1024xf32>
    %12 = arith.mulf %8, %11 : vector<4x1024xf32>
    %13 = arith.subf %4, %3 : vector<4x1024xf32>
    %14 = arith.mulf %13, %12 : vector<4x1024xf32>
    %cst_5 = arith.constant 0.000000e+00 : f32
    %15 = vector.broadcast %cst_5 : f32 to vector<4x1024xf32>
    %16 = arith.cmpf ogt, %14, %15 : vector<4x1024xf32>
    %cst_6 = arith.constant 5.000000e-01 : f32
    %17 = vector.broadcast %cst_6 : f32 to vector<4x1024xf32>
    %18 = arith.mulf %17, %14 : vector<4x1024xf32>
    %19 = arith.select %16, %14, %18 : vector<4x1024xi1>, vector<4x1024xf32>
    %20 = math.absf %19 : vector<4x1024xf32>
    %cst_7 = arith.constant 1.000000e+00 : f32
    %21 = vector.broadcast %cst_7 : f32 to vector<4x1024xf32>
    %22 = arith.mulf %21, %20 : vector<4x1024xf32>
    %cst_8 = arith.constant 5.000000e-01 : f32
    %23 = vector.broadcast %cst_8 : f32 to vector<4x1024xf32>
    %24 = arith.mulf %23, %22 : vector<4x1024xf32>
    %25 = math.tanh %24 : vector<4x1024xf32>
    %cst_9 = arith.constant 5.000000e-01 : f32
    %26 = vector.broadcast %cst_9 : f32 to vector<4x1024xf32>
    %27 = arith.mulf %26, %25 : vector<4x1024xf32>
    %c0_10 = arith.constant 0 : index
    %c0_11 = arith.constant 0 : index
    %28 = vector.load %arg4[%c0_10, %c0_11] : memref<4x1024xf32, #tpu.memory_space<vmem>>, vector<4x1024xf32>
    %29 = arith.addf %28, %27 : vector<4x1024xf32>
    %c0_12 = arith.constant 0 : index
    %c0_13 = arith.constant 0 : index
    %30 = vector.load %arg4[%c0_12, %c0_13] : memref<4x1024xf32, #tpu.memory_space<vmem>>, vector<4x1024xf32>
    tpu.vector_store %arg4[%c0_12, %c0_13], %29 {strides = array<i32>} : memref<4x1024xf32, #tpu.memory_space<vmem>>, vector<4x1024xf32>,
    %c0_i32_14 = arith.constant 0 : i32
    %31 = arith.cmpi eq, %arg0, %c0_i32_14 : i32
    %32 = arith.extui %31 : i1 to i32
    %c0_i32_15 = arith.constant 0 : i32
    %33 = arith.cmpi ne, %32, %c0_i32_15 : i32
    scf.if %33 {
      %c0_16 = arith.constant 0 : index
      %c0_17 = arith.constant 0 : index
      %34 = vector.load %arg4[%c0_16, %c0_17] : memref<4x1024xf32, #tpu.memory_space<vmem>>, vector<4x1024xf32>
      %35 = vector.shape_cast %34 : vector<4x1024xf32> to vector<1x4x1024xf32>
      %cst_18 = arith.constant dense<0.000000e+00> : vector<1xf32>
      %36 = vector.multi_reduction <add>, %35, %cst_18 [1, 2] : vector<1x4x1024xf32> to vector<1xf32>
      %37 = vector.shape_cast %36 : vector<1xf32> to vector<1x1x1xf32>
      %38 = vector.extract %37[0, 0, 0] : f32 from vector<1x1x1xf32>
      %39 = vector.broadcast %38 : f32 to vector<1x128xf32>
      %c0_19 = arith.constant 0 : index
      %c0_20 = arith.constant 0 : index
      %40 = vector.load %arg3[%c0_19, %c0_20] : memref<1x128xf32, #tpu.memory_space<vmem>>, vector<1x128xf32>
      tpu.vector_store %arg3[%c0_19, %c0_20], %39 {strides = array<i32>} : memref<1x128xf32, #tpu.memory_space<vmem>>, vector<1x128xf32>,
    } else {
    }
    return
  }
  func.func @transform_0(%arg0: i32) -> (i32, i32) {
    %c0_i32 = arith.constant 0 : i32
    %c0_i32_0 = arith.constant 0 : i32
    return %arg0, %c0_i32 : i32, i32
  }
  func.func @transform_1(%arg0: i32) -> (i32, i32) {
    %c0_i32 = arith.constant 0 : i32
    %c0_i32_0 = arith.constant 0 : i32
    return %arg0, %c0_i32 : i32, i32
  }
  func.func @transform_2(%arg0: i32) -> (i32, i32) {
    %c0_i32 = arith.constant 0 : i32
    %c0_i32_0 = arith.constant 0 : i32
    %c0_i32_1 = arith.constant 0 : i32
    return %c0_i32, %c0_i32_0 : i32, i32
  }
}

</mosaic_0001>

<llo_original>
// kernel: tpu_custom_call.1
$region0: #{tpu_custom_call.1}
  #allocation0 [shape = 'u32[]', space=smem, size = 0x4, offset = 0x4, fixed_abs, tag = 'smem constant byte address 0x4 - core index']
  #allocation1 [shape = 'u32[144,128]{1,0:T(1,128)}', space=vmem, size = 0x12000, scoped, tag = 'internal scratch']
  #allocation2 [shape = 'f32[4,1024]{1,0:T(4,128)}', space=vmem, size = 0x4000, scoped, tag = 'scratch operand']
  %s0 = inlined_call_operand.hbm [shape: f32[4,1024], index: 0, kind: input, shape index: {}]
  %s1 = inlined_call_operand.hbm [shape: f32[4,1024], index: 1, kind: input, shape index: {}]
  %s2 = inlined_call_operand.hbm [shape: f32[1,128], index: 2, kind: output, shape index: {}]
  %s3 = sld [smem:[#allocation0]]
  $region34: #{tpu_custom_call.1} parent=0
    _
  %s5 = ssub.s32 1, %s3
  %s6 = scalar_select 0, %s5, %s3
  $region1: #{tpu_custom_call.1} parent=0
    #allocation3 [shape = 'u8[16384]{0}', space=vmem, size = 0x4000, scoped, tag = 'input window, operand 0, single buffered']
    #allocation4 [shape = 's32[1]{0}', space=sflag, size = 0x4, scoped, tag = 'scoped memory for tpu_custom_call.1']
    #allocation5 [shape = 's32[1]{0}', space=sflag, size = 0x4, scoped, tag = 'scoped memory for tpu_custom_call.1']
    #allocation6 [shape = 'u8[16384]{0}', space=vmem, size = 0x4000, scoped, tag = 'input window, operand 1, single buffered']
    #allocation7 [shape = 's32[1]{0}', space=sflag, size = 0x4, scoped, tag = 'scoped memory for tpu_custom_call.1']
    #allocation8 [shape = 'u8[512]{0}', space=vmem, size = 0x400, scoped, tag = 'output window, operand 0, single buffered']
    %7 = vsyncpa [#allocation4], 0
    %8 = vsyncpa [#allocation7], 0
    %9 = vsyncpa [#allocation5], 0
    // Predicated region
    $region2: #{tpu_custom_call.1} parent=1 // pred_check
      _
    $region3: #{tpu_custom_call.1} parent=1 // pred_check_branch
      %11 = sbr.rel (0) target = $region5
    $region4: #{tpu_custom_call.1} parent=1 // pred_region
      %s13 = ssub.s32 512, 512
      %14 = vsyncadd [#allocation4], %s13
      %s16 = sshll.u32 [#allocation3], 4
      %s17 = int_to_ptr.vmem [resolvable:$true] %s16
      %19 = dma.hbm_to_vmem [thread:$0]  %s0, 512, %s17, [#allocation4]
    $region5: #{tpu_custom_call.1} parent=1 // pred_fallthru
      _
    // Predicated region
    $region6: #{tpu_custom_call.1} parent=1 // pred_check
      _
    $region7: #{tpu_custom_call.1} parent=1 // pred_check_branch
      %21 = sbr.rel (0) target = $region9
    $region8: #{tpu_custom_call.1} parent=1 // pred_region
      %s23 = ssub.s32 512, 512
      %24 = vsyncadd [#allocation7], %s23
      %s26 = sshll.u32 [#allocation6], 4
      %s27 = int_to_ptr.vmem [resolvable:$true] %s26
      %29 = dma.hbm_to_vmem [thread:$0]  %s1, 512, %s27, [#allocation7]
    $region9: #{tpu_custom_call.1} parent=1 // pred_fallthru
      _
    // Predicated region
    $region10: #{tpu_custom_call.1} parent=1 // pred_check
      _
    $region11: #{tpu_custom_call.1} parent=1 // pred_check_branch
      %31 = sbr.rel (0) target = $region13
    $region12: #{tpu_custom_call.1} parent=1 // pred_region
      %32 = dma.done [#allocation4], 512
    $region13: #{tpu_custom_call.1} parent=1 // pred_fallthru
      _
    // Predicated region
    $region14: #{tpu_custom_call.1} parent=1 // pred_check
      _
    $region15: #{tpu_custom_call.1} parent=1 // pred_check_branch
      %34 = sbr.rel (0) target = $region17
    $region16: #{tpu_custom_call.1} parent=1 // pred_region
      %35 = dma.done [#allocation7], 512
    $region17: #{tpu_custom_call.1} parent=1 // pred_fallthru
      _
    %p36 = scmp.eq.s32.totalorder 0, 0
    // Predicated region
    $region18: #{tpu_custom_call.1} parent=1 // pred_check
      %p37 = pneg %p36
    $region19: #{tpu_custom_call.1} parent=1 // pred_check_branch
      %39 = sbr.rel (%p37) target = $region21
    $region20: #{tpu_custom_call.1} parent=1 // pred_region
      %40 = vst [vmem:[#allocation2] sm:$0xff] 0.0
      %41 = vst [vmem:[#allocation2 + $0x8] sm:$0xff] 0.0
      %42 = vst [vmem:[#allocation2 + $0x10] sm:$0xff] 0.0
      %43 = vst [vmem:[#allocation2 + $0x18] sm:$0xff] 0.0
    $region21: #{tpu_custom_call.1} parent=1 // pred_fallthru
      _
    %v44 = vld [vmem:[#allocation3] sm:$0xff]
    %v45 = vld [vmem:[#allocation3 + $0x8] sm:$0xff]
    %v46 = vld [vmem:[#allocation3 + $0x10] sm:$0xff]
    %v47 = vld [vmem:[#allocation3 + $0x18] sm:$0xff]
    %v48 = vld [vmem:[#allocation6] sm:$0xff]
    %v49 = vld [vmem:[#allocation6 + $0x8] sm:$0xff]
    %v50 = vld [vmem:[#allocation6 + $0x10] sm:$0xff]
    %v51 = vld [vmem:[#allocation6 + $0x18] sm:$0xff]
    %v52 = vand.u32 2147483647, %v48
    %v53 = vand.u32 2147483647, %v49
    %v54 = vand.u32 2147483647, %v50
    %v55 = vand.u32 2147483647, %v51
    %v56 = vadd.f32 %v52, 1e-08
    %v57 = vadd.f32 %v53, 1e-08
    %v58 = vadd.f32 %v54, 1e-08
    %v59 = vadd.f32 %v55, 1e-08
    %v60 = vrcp.pop %v56
    %v61 = vrcp.pop %v57
    %v62 = vrcp.pop %v58
    %v63 = vrcp.pop %v59
    %v64 = vmul.f32 %v56, %v60
    %v65 = vmul.f32 %v57, %v61
    %v66 = vmul.f32 %v58, %v62
    %v67 = vmul.f32 %v59, %v63
    %v68 = vsub.f32 2.0, %v64
    %v69 = vsub.f32 2.0, %v65
    %v70 = vsub.f32 2.0, %v66
    %v71 = vsub.f32 2.0, %v67
    %v72 = vmul.f32 %v60, %v68
    %v73 = vmul.f32 %v61, %v69
    %v74 = vmul.f32 %v62, %v70
    %v75 = vmul.f32 %v63, %v71
    %v76 = vsub.f32 %v48, %v44
    %v77 = vsub.f32 %v49, %v45
    %v78 = vsub.f32 %v50, %v46
    %v79 = vsub.f32 %v51, %v47
    %v80 = vmul.f32 %v76, %v72
    %v81 = vmul.f32 %v77, %v73
    %v82 = vmul.f32 %v78, %v74
    %v83 = vmul.f32 %v79, %v75
    %vm84 = vcmp.gt.f32.partialorder %v80, 0.0
    %vm85 = vcmp.gt.f32.partialorder %v81, 0.0
    %vm86 = vcmp.gt.f32.partialorder %v82, 0.0
    %vm87 = vcmp.gt.f32.partialorder %v83, 0.0
    %v88 = vmul.f32 %v80, 0.5
    %v89 = vmul.f32 %v81, 0.5
    %v90 = vmul.f32 %v82, 0.5
    %v91 = vmul.f32 %v83, 0.5
    %v92 = vsel %vm84, %v80, %v88
    %v93 = vsel %vm85, %v81, %v89
    %v94 = vsel %vm86, %v82, %v90
    %v95 = vsel %vm87, %v83, %v91
    %v96 = vand.u32 2147483647, %v92
    %v97 = vand.u32 2147483647, %v93
    %v98 = vand.u32 2147483647, %v94
    %v99 = vand.u32 2147483647, %v95
    %v100 = vmul.f32 %v96, 0.5
    %v101 = vmul.f32 %v97, 0.5
    %v102 = vmul.f32 %v98, 0.5
    %v103 = vmul.f32 %v99, 0.5
    %v104 = vtanh.pop %v100
    %v105 = vtanh.pop %v101
    %v106 = vtanh.pop %v102
    %v107 = vtanh.pop %v103
    %v108 = vmul.f32 %v104, 0.5
    %v109 = vmul.f32 %v105, 0.5
    %v110 = vmul.f32 %v106, 0.5
    %v111 = vmul.f32 %v107, 0.5
    %v112 = vld [vmem:[#allocation2] sm:$0xff]
    %v113 = vld [vmem:[#allocation2 + $0x8] sm:$0xff]
    %v114 = vld [vmem:[#allocation2 + $0x10] sm:$0xff]
    %v115 = vld [vmem:[#allocation2 + $0x18] sm:$0xff]
    %v116 = vadd.f32 %v112, %v108
    %v117 = vadd.f32 %v113, %v109
    %v118 = vadd.f32 %v114, %v110
    %v119 = vadd.f32 %v115, %v111
    %120 = vst [vmem:[#allocation2] sm:$0xff] %v116
    %121 = vst [vmem:[#allocation2 + $0x8] sm:$0xff] %v117
    %122 = vst [vmem:[#allocation2 + $0x10] sm:$0xff] %v118
    %123 = vst [vmem:[#allocation2 + $0x18] sm:$0xff] %v119
    // Predicated region
    $region22: #{tpu_custom_call.1} parent=1 // pred_check
      %p124 = pneg %p36
    $region23: #{tpu_custom_call.1} parent=1 // pred_check_branch
      %126 = sbr.rel (%p124) target = $region25
    $region24: #{tpu_custom_call.1} parent=1 // pred_region
      %v127 = vld [vmem:[#allocation2] sm:$0xff]
      %v128 = vld [vmem:[#allocation2 + $0x8] sm:$0xff]
      %v129 = vld [vmem:[#allocation2 + $0x10] sm:$0xff]
      %v130 = vld [vmem:[#allocation2 + $0x18] sm:$0xff]
      %v135 = vcombine.high %v127, %v127
      %v136 = vcombine.high %v128, %v128
      %v137 = vcombine.high %v129, %v129
      %v138 = vcombine.high %v130, %v130
      %vm143 = vcmask 1043456
      %v144 = vsel %vm143, %v127, 0.0
      %v145 = vsel %vm143, %v135, 0.0
      %v146 = vadd.f32 %v144, %v145
      %v147 = vsel %vm143, %v128, 0.0
      %v148 = vadd.f32 %v146, %v147
      %v149 = vsel %vm143, %v136, 0.0
      %v150 = vadd.f32 %v148, %v149
      %v151 = vsel %vm143, %v129, 0.0
      %v152 = vadd.f32 %v150, %v151
      %v153 = vsel %vm143, %v137, 0.0
      %v154 = vadd.f32 %v152, %v153
      %v155 = vsel %vm143, %v130, 0.0
      %v156 = vadd.f32 %v154, %v155
      %v157 = vsel %vm143, %v138, 0.0
      %v158 = vadd.f32 %v156, %v157
      %159 = vadd.xlane.f32.xlu0 %v158
      %v160 = vpop.xlane.xlu0 %159
      %v161 = vrot.slane %v160, 4
      %v162 = vadd.f32 %v160, %v161
      %v163 = vrot.slane %v162, 2
      %v164 = vadd.f32 %v162, %v163
      %v165 = vrot.slane %v164, 1
      %v166 = vadd.f32 %v164, %v165
      %s167 = vtos %v166
      %v168 = vstv %s167
      %169 = vst [vmem:[#allocation8] sm:$0x1] %v168
    $region25: #{tpu_custom_call.1} parent=1 // pred_fallthru
      _
    // Predicated region
    $region26: #{tpu_custom_call.1} parent=1 // pred_check
      _
    $region27: #{tpu_custom_call.1} parent=1 // pred_check_branch
      %171 = sbr.rel (0) target = $region29
    $region28: #{tpu_custom_call.1} parent=1 // pred_region
      %s173 = ssub.s32 16, 16
      %174 = vsyncadd [#allocation5], %s173
      %s176 = sshll.u32 [#allocation8], 4
      %s177 = int_to_ptr.vmem [resolvable:$true] %s176
      %179 = dma.vmem_to_hbm [thread:$0]  %s177, 16, %s2, [#allocation5]
    $region29: #{tpu_custom_call.1} parent=1 // pred_fallthru
      _
    // Predicated region
    $region30: #{tpu_custom_call.1} parent=1 // pred_check
      _
    $region31: #{tpu_custom_call.1} parent=1 // pred_check_branch
      %181 = sbr.rel (0) target = $region33
    $region32: #{tpu_custom_call.1} parent=1 // pred_region
      %182 = dma.done [#allocation5], 16
    $region33: #{tpu_custom_call.1} parent=1 // pred_fallthru
      _
    %183 = vsyncpa [#allocation4], 1
    %184 = vsyncpa [#allocation7], 1
    %185 = vsyncpa [#allocation5], 1

</llo_original>
